<compile_context>
chip_gen: v5e
topology: v5e:2x2
jax: 0.10.0
libtpu: 0.0.40
codegen_flags: <defaults>
</compile_context>

<pallas_src>
import functools

import jax
import jax.numpy as jnp
from jax.experimental import pallas as pl
from jax.experimental.pallas import tpu as pltpu

LANE = 128  # padded feature width used internally for every layer


def _layer_dims(state_size, action_size):
    return [(state_size, 64), (64, 32), (32, 10), (10, action_size)]


def _round_up(x, m):
    return (x + m - 1) // m * m


def qnetwork_kernel(x_ref, w_ref, b_ref, out_ref):
    """Fused 4-layer MLP on one (TILE_B, state_size) batch tile.

    x_ref:   (TILE_B, S)        f32  states (S = real state_size, lane-narrow)
    w_ref:   (4, 128, 128)      bf16 zero-padded weights (layer i = w_ref[i])
    b_ref:   (4, 128)           f32  zero-padded biases
    out_ref: (TILE_B, A)        f32  Q-values (A = real action_size)
    """
    tb, S = x_ref.shape
    A = out_ref.shape[-1]

    x = x_ref[...]
    if S < LANE:
        # In-VMEM lane padding: essentially free vs. 8x wrapper-side HBM inflation.
        x = jnp.concatenate([x, jnp.zeros((tb, LANE - S), x.dtype)], axis=-1)

    h = x  # f32 activations, carried at padded width 128
    for layer in range(4):
        w = w_ref[layer, :, :]            # (128, 128) bf16
        b = b_ref[layer:layer + 1, :]     # (1, 128)   f32
        y = jnp.dot(h.astype(jnp.bfloat16), w,
                    preferred_element_type=jnp.float32) + b
        h = jnp.maximum(y, 0.0) if layer < 3 else y   # ReLU on fc1/fc2/fc2b only

    # Narrow store: only the real action columns go back to HBM.
    out_ref[...] = h[:, :A].astype(out_ref.dtype)


def pack_qnetwork_params(params, state_size, action_size,
                         weight_dtype=jnp.bfloat16):
    """Pack per-layer [in, out] weights / [out] biases into padded VMEM slabs."""
    dims = _layer_dims(state_size, action_size)
    names = ["1", "2", "2b", "3"]
    w_pack = jnp.zeros((4, LANE, LANE), jnp.float32)
    b_pack = jnp.zeros((4, LANE), jnp.float32)
    for i, ((fan_in, fan_out), name) in enumerate(zip(dims, names)):
        w_pack = w_pack.at[i, :fan_in, :fan_out].set(params[f"w{name}"])
        b_pack = b_pack.at[i, :fan_out].set(params[f"b{name}"].reshape(-1))
    return w_pack.astype(weight_dtype), b_pack


@functools.partial(jax.jit, static_argnames=("action_size", "tile_b"))
def qnetwork_forward(state, w_pack, b_pack, *, action_size, tile_b=1024):
    """state: [B, state_size] -> Q-values [B, action_size]."""
    B, S = state.shape
    assert S <= LANE, "state_size must fit in one 128-lane tile"
    assert action_size <= LANE, "action_size must fit in one 128-lane tile"
    assert tile_b % 8 == 0, "tile_b must be a multiple of 8 (sublane constraint)"

    # Batch tile selection:
    #  * large B : tile_b (amortizes ~0.35us per-grid-step overhead)
    #  * mid B   : split into exactly 2 tiles so v7x's two TensorCores both work
    #  * small B : single tile rounded up to a sublane multiple
    if B >= 2 * tile_b:
        tb = tile_b
    elif B >= 512:
        tb = _round_up(-(-B // 2), 8)
    else:
        tb = _round_up(B, 8)
    pB = _round_up(B, tb)

    x = state.astype(jnp.float32)
    if pB > B:
        x = jnp.pad(x, ((0, pB - B), (0, 0)))  # pad rows only, never lanes

    grid = (pB // tb,)
    # Padded MXU work (what actually executes) + real (narrow) HBM traffic.
    flops = 2 * pB * LANE * LANE * 4
    bytes_accessed = (pB * S * 4
                      + w_pack.size * w_pack.dtype.itemsize
                      + b_pack.size * 4
                      + pB * action_size * 4)

    out = pl.pallas_call(
        qnetwork_kernel,
        out_shape=jax.ShapeDtypeStruct((pB, action_size), jnp.float32),
        grid_spec=pltpu.PrefetchScalarGridSpec(
            num_scalar_prefetch=0,
            grid=grid,
            in_specs=[
                # (tb, S): last dim equals full array dim -> legal, lane-narrow DMA.
                pl.BlockSpec((tb, S), lambda i: (i, 0)),
                pl.BlockSpec((4, LANE, LANE), lambda i: (0, 0, 0)),  # weights, VMEM-resident
                pl.BlockSpec((4, LANE), lambda i: (0, 0)),           # biases,  VMEM-resident
            ],
            out_specs=pl.BlockSpec((tb, action_size), lambda i: (i, 0)),
        ),
        compiler_params=pltpu.CompilerParams(
            dimension_semantics=("parallel",)),
        cost_estimate=pl.CostEstimate(
            flops=flops, transcendentals=0, bytes_accessed=bytes_accessed),
    )(x, w_pack, b_pack)

    # Only a row slice remains (column narrowing is done inside the kernel).
    return out[:B] if pB > B else out


def init_qnetwork_params(key, state_size, action_size):
    """PyTorch nn.Linear-style init; weights stored as [in_features, out_features]."""
    dims = _layer_dims(state_size, action_size)
    names = ["1", "2", "2b", "3"]
    params = {}
    for (fan_in, fan_out), name in zip(dims, names):
        key, kw, kb = jax.random.split(key, 3)
        bound = 1.0 / jnp.sqrt(float(fan_in))
        params[f"w{name}"] = jax.random.uniform(
            kw, (fan_in, fan_out), jnp.float32, -bound, bound)
        params[f"b{name}"] = jax.random.uniform(
            kb, (fan_out,), jnp.float32, -bound, bound)
    return params


def qnetwork_ref_f32(state, params):
    """Pure-f32 JAX reference (matches the PyTorch module exactly)."""
    x = jnp.maximum(state @ params["w1"] + params["b1"], 0.0)
    x = jnp.maximum(x @ params["w2"] + params["b2"], 0.0)
    x = jnp.maximum(x @ params["w2b"] + params["b2b"], 0.0)
    return x @ params["w3"] + params["b3"]


def qnetwork_ref_mixed(state, params):
    """Reference with the kernel's bf16-dot / f32-accumulate arithmetic."""
    h = state
    for name, relu in [("1", True), ("2", True), ("2b", True), ("3", False)]:
        w = params[f"w{name}"].astype(jnp.bfloat16)
        h = jnp.dot(h.astype(jnp.bfloat16), w,
                    preferred_element_type=jnp.float32) + params[f"b{name}"]
        if relu:
            h = jnp.maximum(h, 0.0)
    return h


if __name__ == "__main__":
    key = jax.random.PRNGKey(0)
    state_size = 16
    action_size = 4
    batch = 8

    kp, kx = jax.random.split(key)
    params = init_qnetwork_params(kp, state_size, action_size)
    w_pack, b_pack = pack_qnetwork_params(params, state_size, action_size)
    state = jax.random.normal(kx, (batch, state_size), jnp.float32)

    out = qnetwork_forward(state, w_pack, b_pack, action_size=action_size)
    out = jax.block_until_ready(out)
    assert out.shape == (batch, action_size)

    # Tight check against the same (bf16-dot, f32-acc) arithmetic.
    ref_mixed = qnetwork_ref_mixed(state, params)
    assert jnp.allclose(out, ref_mixed, atol=1e-3, rtol=1e-3), \
        f"mismatch vs mixed-precision ref: {jnp.max(jnp.abs(out - ref_mixed))}"
    # Loose sanity check against the full-f32 PyTorch-equivalent reference.
    ref_f32 = qnetwork_ref_f32(state, params)
    assert jnp.allclose(out, ref_f32, atol=5e-2, rtol=5e-2), \
        f"mismatch vs f32 ref: {jnp.max(jnp.abs(out - ref_f32))}"

    # Also exercise a larger, multi-grid-step batch (hits the 2-tile v7x path).
    big_state = jax.random.normal(kx, (600, state_size), jnp.float32)
    big_out = jax.block_until_ready(
        qnetwork_forward(big_state, w_pack, b_pack, action_size=action_size))
    assert big_out.shape == (600, action_size)
    assert jnp.allclose(big_out, qnetwork_ref_mixed(big_state, params),
                        atol=1e-3, rtol=1e-3)

    print("KERNEL_OK")
</pallas_src>

<mosaic_0001>
module attributes {stable_mosaic.version = 11 : i64} {
  func.func @qnetwork_kernel(%arg0: i32, %arg1: memref<8x16xf32, #tpu.memory_space<vmem>>, %arg2: memref<4x128x128xbf16, #tpu.memory_space<vmem>>, %arg3: memref<4x128xf32, #tpu.memory_space<vmem>>, %arg4: memref<8x4xf32, #tpu.memory_space<vmem>>) attributes {dimension_semantics = [#tpu.dimension_semantics<parallel>], iteration_bounds = array<i64: 1>, scalar_prefetch = 0 : i64, scratch_operands = 0 : i64, tpu.core_type = #tpu.core_type<tc>, window_params = [{transform_indices = @transform_0, window_bounds = array<i64: 8, 16>}, {pipeline_mode = #tpu.pipeline_mode<synchronous>, transform_indices = @transform_1, window_bounds = array<i64: 4, 128, 128>}, {pipeline_mode = #tpu.pipeline_mode<synchronous>, transform_indices = @transform_2, window_bounds = array<i64: 4, 128>}, {transform_indices = @transform_3, window_bounds = array<i64: 8, 4>}]} {
    %c0 = arith.constant 0 : index
    %c0_0 = arith.constant 0 : index
    %0 = vector.load %arg1[%c0, %c0_0] : memref<8x16xf32, #tpu.memory_space<vmem>>, vector<8x16xf32>
    %cst = arith.constant 0.000000e+00 : f32
    %1 = vector.broadcast %cst : f32 to vector<8x112xf32>
    %2 = tpu.concatenate %0, %1 in 1 : vector<8x16xf32>, vector<8x112xf32> -> vector<8x128xf32>
    %c0_1 = arith.constant 0 : index
    %c0_2 = arith.constant 0 : index
    %c0_3 = arith.constant 0 : index
    %3 = vector.load %arg2[%c0_1, %c0_2, %c0_3] : memref<4x128x128xbf16, #tpu.memory_space<vmem>>, vector<1x128x128xbf16>
    %4 = vector.shape_cast %3 : vector<1x128x128xbf16> to vector<128x128xbf16>
    %c0_4 = arith.constant 0 : index
    %c0_5 = arith.constant 0 : index
    %5 = vector.load %arg3[%c0_4, %c0_5] : memref<4x128xf32, #tpu.memory_space<vmem>>, vector<1x128xf32>
    %6 = arith.truncf %2 : vector<8x128xf32> to vector<8x128xbf16>
    %cst_6 = arith.constant dense<0.000000e+00> : vector<8x128xf32>
    %7 = tpu.matmul %6, %4, %cst_6 {dimension_numbers = #tpu.dot_dimension_numbers<[1], [0], [0], [1], [0, 0, 1, 1], [], []>} : vector<8x128xbf16>, vector<128x128xbf16>, vector<8x128xf32> -> vector<8x128xf32>
    %8 = vector.broadcast %5 : vector<1x128xf32> to vector<8x128xf32>
    %9 = arith.addf %7, %8 : vector<8x128xf32>
    %cst_7 = arith.constant 0.000000e+00 : f32
    %10 = vector.broadcast %cst_7 : f32 to vector<8x128xf32>
    %11 = arith.maximumf %9, %10 : vector<8x128xf32>
    %c1 = arith.constant 1 : index
    %c0_8 = arith.constant 0 : index
    %c0_9 = arith.constant 0 : index
    %12 = vector.load %arg2[%c1, %c0_8, %c0_9] : memref<4x128x128xbf16, #tpu.memory_space<vmem>>, vector<1x128x128xbf16>
    %13 = vector.shape_cast %12 : vector<1x128x128xbf16> to vector<128x128xbf16>
    %c1_10 = arith.constant 1 : index
    %c0_11 = arith.constant 0 : index
    %14 = vector.load %arg3[%c1_10, %c0_11] : memref<4x128xf32, #tpu.memory_space<vmem>>, vector<1x128xf32>
    %15 = arith.truncf %11 : vector<8x128xf32> to vector<8x128xbf16>
    %cst_12 = arith.constant dense<0.000000e+00> : vector<8x128xf32>
    %16 = tpu.matmul %15, %13, %cst_12 {dimension_numbers = #tpu.dot_dimension_numbers<[1], [0], [0], [1], [0, 0, 1, 1], [], []>} : vector<8x128xbf16>, vector<128x128xbf16>, vector<8x128xf32> -> vector<8x128xf32>
    %17 = vector.broadcast %14 : vector<1x128xf32> to vector<8x128xf32>
    %18 = arith.addf %16, %17 : vector<8x128xf32>
    %cst_13 = arith.constant 0.000000e+00 : f32
    %19 = vector.broadcast %cst_13 : f32 to vector<8x128xf32>
    %20 = arith.maximumf %18, %19 : vector<8x128xf32>
    %c2 = arith.constant 2 : index
    %c0_14 = arith.constant 0 : index
    %c0_15 = arith.constant 0 : index
    %21 = vector.load %arg2[%c2, %c0_14, %c0_15] : memref<4x128x128xbf16, #tpu.memory_space<vmem>>, vector<1x128x128xbf16>
    %22 = vector.shape_cast %21 : vector<1x128x128xbf16> to vector<128x128xbf16>
    %c2_16 = arith.constant 2 : index
    %c0_17 = arith.constant 0 : index
    %23 = vector.load %arg3[%c2_16, %c0_17] : memref<4x128xf32, #tpu.memory_space<vmem>>, vector<1x128xf32>
    %24 = arith.truncf %20 : vector<8x128xf32> to vector<8x128xbf16>
    %cst_18 = arith.constant dense<0.000000e+00> : vector<8x128xf32>
    %25 = tpu.matmul %24, %22, %cst_18 {dimension_numbers = #tpu.dot_dimension_numbers<[1], [0], [0], [1], [0, 0, 1, 1], [], []>} : vector<8x128xbf16>, vector<128x128xbf16>, vector<8x128xf32> -> vector<8x128xf32>
    %26 = vector.broadcast %23 : vector<1x128xf32> to vector<8x128xf32>
    %27 = arith.addf %25, %26 : vector<8x128xf32>
    %cst_19 = arith.constant 0.000000e+00 : f32
    %28 = vector.broadcast %cst_19 : f32 to vector<8x128xf32>
    %29 = arith.maximumf %27, %28 : vector<8x128xf32>
    %c3 = arith.constant 3 : index
    %c0_20 = arith.constant 0 : index
    %c0_21 = arith.constant 0 : index
    %30 = vector.load %arg2[%c3, %c0_20, %c0_21] : memref<4x128x128xbf16, #tpu.memory_space<vmem>>, vector<1x128x128xbf16>
    %31 = vector.shape_cast %30 : vector<1x128x128xbf16> to vector<128x128xbf16>
    %c3_22 = arith.constant 3 : index
    %c0_23 = arith.constant 0 : index
    %32 = vector.load %arg3[%c3_22, %c0_23] : memref<4x128xf32, #tpu.memory_space<vmem>>, vector<1x128xf32>
    %33 = arith.truncf %29 : vector<8x128xf32> to vector<8x128xbf16>
    %cst_24 = arith.constant dense<0.000000e+00> : vector<8x128xf32>
    %34 = tpu.matmul %33, %31, %cst_24 {dimension_numbers = #tpu.dot_dimension_numbers<[1], [0], [0], [1], [0, 0, 1, 1], [], []>} : vector<8x128xbf16>, vector<128x128xbf16>, vector<8x128xf32> -> vector<8x128xf32>
    %35 = vector.broadcast %32 : vector<1x128xf32> to vector<8x128xf32>
    %36 = arith.addf %34, %35 : vector<8x128xf32>
    %37 = vector.extract_strided_slice %36 {offsets = [0, 0], sizes = [8, 4], strides = [1, 1]} : vector<8x128xf32> to vector<8x4xf32>
    %c0_25 = arith.constant 0 : index
    %c0_26 = arith.constant 0 : index
    %38 = vector.load %arg4[%c0_25, %c0_26] : memref<8x4xf32, #tpu.memory_space<vmem>>, vector<8x4xf32>
    tpu.vector_store %arg4[%c0_25, %c0_26], %37 {strides = array<i32>} : memref<8x4xf32, #tpu.memory_space<vmem>>, vector<8x4xf32>,
    return
  }
  func.func @transform_0(%arg0: i32) -> (i32, i32) {
    %c0_i32 = arith.constant 0 : i32
    %c0_i32_0 = arith.constant 0 : i32
    return %arg0, %c0_i32 : i32, i32
  }
  func.func @transform_1(%arg0: i32) -> (i32, i32, i32) {
    %c0_i32 = arith.constant 0 : i32
    %c0_i32_0 = arith.constant 0 : i32
    %c0_i32_1 = arith.constant 0 : i32
    %c0_i32_2 = arith.constant 0 : i32
    return %c0_i32, %c0_i32_0, %c0_i32_1 : i32, i32, i32
  }
  func.func @transform_2(%arg0: i32) -> (i32, i32) {
    %c0_i32 = arith.constant 0 : i32
    %c0_i32_0 = arith.constant 0 : i32
    %c0_i32_1 = arith.constant 0 : i32
    return %c0_i32, %c0_i32_0 : i32, i32
  }
  func.func @transform_3(%arg0: i32) -> (i32, i32) {
    %c0_i32 = arith.constant 0 : i32
    %c0_i32_0 = arith.constant 0 : i32
    return %arg0, %c0_i32 : i32, i32
  }
}

</mosaic_0001>

<llo_original>
// kernel: qnetwork_forward.1
$region0: #{qnetwork_forward.1}
  #allocation0 [shape = 'u32[]', space=smem, size = 0x4, offset = 0x4, fixed_abs, tag = 'smem constant byte address 0x4 - core index']
  #allocation1 [shape = 'u32[72,128]{1,0:T(1,128)}', space=vmem, size = 0x9000, scoped, tag = 'internal scratch']
  %s0 = inlined_call_operand.hbm [shape: f32[8,16], index: 0, kind: input, shape index: {}]
  %s1 = inlined_call_operand.hbm [shape: bf16[4,128,128], index: 1, kind: input, shape index: {}]
  %s2 = inlined_call_operand.hbm [shape: f32[4,128], index: 2, kind: input, shape index: {}]
  %s3 = inlined_call_operand.vmem [shape: f32[8,4], index: 3, kind: output, shape index: {}]
  %s4 = sld [smem:[#allocation0]]
  $region34: #{qnetwork_forward.1} parent=0
    _
  %s6 = ssub.s32 1, %s4
  %s7 = scalar_select 0, %s6, %s4
  $region1: #{qnetwork_forward.1} parent=0
    #allocation2 [shape = 'u8[4096]{0}', space=vmem, size = 0x1000, scoped, tag = 'input window, operand 0, single buffered']
    #allocation3 [shape = 's32[1]{0}', space=sflag, size = 0x4, scoped, tag = 'scoped memory for qnetwork_forward.1']
    #allocation4 [shape = 'u8[131072]{0}', space=vmem, size = 0x20000, scoped, tag = 'input window, operand 1, single buffered']
    #allocation5 [shape = 's32[1]{0}', space=sflag, size = 0x4, scoped, tag = 'scoped memory for qnetwork_forward.1']
    #allocation6 [shape = 'u8[2048]{0}', space=vmem, size = 0x800, scoped, tag = 'input window, operand 2, single buffered']
    %8 = vsyncpa [#allocation3], 0
    %9 = vsyncpa [#allocation5], 0
    // Predicated region
    $region2: #{qnetwork_forward.1} parent=1 // pred_check
      _
    $region3: #{qnetwork_forward.1} parent=1 // pred_check_branch
      %11 = sbr.rel (0) target = $region5
    $region4: #{qnetwork_forward.1} parent=1 // pred_region
      %13 = vsyncadd [#allocation3], 0
      %s15 = sshll.u32 %s0, 4
      %s16 = int_to_ptr.hbm [resolvable:$true] %s15
      %s17 = sshll.u32 [#allocation2], 4
      %s18 = int_to_ptr.vmem [resolvable:$true] %s17
      %20 = dma.hbm_to_vmem [thread:$0]  %s16, 128, %s18, [#allocation3]
    $region5: #{qnetwork_forward.1} parent=1 // pred_fallthru
      _
    // Predicated region
    $region6: #{qnetwork_forward.1} parent=1 // pred_check
      _
    $region7: #{qnetwork_forward.1} parent=1 // pred_check_branch
      %22 = sbr.rel (0) target = $region9
    $region8: #{qnetwork_forward.1} parent=1 // pred_region
      %24 = vsyncadd [#allocation5], 0
      %s25 = sshll.u32 %s1, 4
      %s26 = int_to_ptr.hbm [resolvable:$true] %s25
      %s27 = sshll.u32 [#allocation4], 4
      %s28 = int_to_ptr.vmem [resolvable:$true] %s27
      %33 = dma.hbm_to_vmem [thread:$0]  %s26, 4096, %s28, [#allocation5], 64, 64, 4
    $region9: #{qnetwork_forward.1} parent=1 // pred_fallthru
      _
    // Predicated region
    $region10: #{qnetwork_forward.1} parent=1 // pred_check
      _
    $region11: #{qnetwork_forward.1} parent=1 // pred_check_branch
      %35 = sbr.rel (0) target = $region13
    $region12: #{qnetwork_forward.1} parent=1 // pred_region
      %37 = vsyncadd [#allocation5], 0
      %s39 = sshll.u32 %s2, 4
      %s40 = int_to_ptr.hbm [resolvable:$true] %s39
      %s41 = sshll.u32 [#allocation6], 4
      %s42 = int_to_ptr.vmem [resolvable:$true] %s41
      %44 = dma.hbm_to_vmem [thread:$0]  %s40, 64, %s42, [#allocation5]
    $region13: #{qnetwork_forward.1} parent=1 // pred_fallthru
      _
    // Predicated region
    $region14: #{qnetwork_forward.1} parent=1 // pred_check
      _
    $region15: #{qnetwork_forward.1} parent=1 // pred_check_branch
      %46 = sbr.rel (0) target = $region17
    $region16: #{qnetwork_forward.1} parent=1 // pred_region
      %48 = dma.done [#allocation3], 128
    $region17: #{qnetwork_forward.1} parent=1 // pred_fallthru
      _
    // Predicated region
    $region18: #{qnetwork_forward.1} parent=1 // pred_check
      _
    $region19: #{qnetwork_forward.1} parent=1 // pred_check_branch
      %50 = sbr.rel (0) target = $region21
    $region20: #{qnetwork_forward.1} parent=1 // pred_region
      %52 = dma.done [#allocation5], 4096
    $region21: #{qnetwork_forward.1} parent=1 // pred_fallthru
      _
    // Predicated region
    $region22: #{qnetwork_forward.1} parent=1 // pred_check
      _
    $region23: #{qnetwork_forward.1} parent=1 // pred_check_branch
      %54 = sbr.rel (0) target = $region25
    $region24: #{qnetwork_forward.1} parent=1 // pred_region
      %56 = dma.done [#allocation5], 64
    $region25: #{qnetwork_forward.1} parent=1 // pred_fallthru
      _
    %v57 = vld [vmem:[#allocation2] sm:$0xff]
    %vm58 = vcmask 130048
    %v59 = vsel %vm58, %v57, 0.0
    %v60 = vld [vmem:[#allocation4] sm:$0xf]
    %v61 = vld [vmem:[#allocation4 + $0x4] sm:$0xf]
    %v62 = vld [vmem:[#allocation4 + $0x8] sm:$0xf]
    %v63 = vld [vmem:[#allocation4 + $0xc] sm:$0xf]
    %v64 = vld [vmem:[#allocation4 + $0x10] sm:$0xf]
    %v65 = vld [vmem:[#allocation4 + $0x14] sm:$0xf]
    %v66 = vld [vmem:[#allocation4 + $0x18] sm:$0xf]
    %v67 = vld [vmem:[#allocation4 + $0x1c] sm:$0xf]
    %v68 = vld [vmem:[#allocation4 + $0x20] sm:$0xf]
    %v69 = vld [vmem:[#allocation4 + $0x24] sm:$0xf]
    %v70 = vld [vmem:[#allocation4 + $0x28] sm:$0xf]
    %v71 = vld [vmem:[#allocation4 + $0x2c] sm:$0xf]
    %v72 = vld [vmem:[#allocation4 + $0x30] sm:$0xf]
    %v73 = vld [vmem:[#allocation4 + $0x34] sm:$0xf]
    %v74 = vld [vmem:[#allocation4 + $0x38] sm:$0xf]
    %v75 = vld [vmem:[#allocation4 + $0x3c] sm:$0xf]
    %v76 = vld [vmem:[#allocation6] sm:$0x1]
    %v77 = vpack.c.bf16 %v59, %v59
    %v78 = vperm.slane %v76, 0
    %v95 = vunpack.c.l.b16 %v60
    %v96 = vunpack.c.l.b16 %v61
    %v97 = vunpack.c.l.b16 %v62
    %v98 = vunpack.c.l.b16 %v63
    %v99 = vunpack.c.l.b16 %v64
    %v100 = vunpack.c.l.b16 %v65
    %v101 = vunpack.c.l.b16 %v66
    %v102 = vunpack.c.l.b16 %v67
    %v103 = vunpack.c.l.b16 %v68
    %v104 = vunpack.c.l.b16 %v69
    %v105 = vunpack.c.l.b16 %v70
    %v106 = vunpack.c.l.b16 %v71
    %v107 = vunpack.c.l.b16 %v72
    %v108 = vunpack.c.l.b16 %v73
    %v109 = vunpack.c.l.b16 %v74
    %v110 = vunpack.c.l.b16 %v75
    %v111 = vpack.c.b16 %v96, %v95
    %v112 = vpack.c.b16 %v98, %v97
    %v113 = vpack.c.b16 %v100, %v99
    %v114 = vpack.c.b16 %v102, %v101
    %v115 = vpack.c.b16 %v104, %v103
    %v116 = vpack.c.b16 %v106, %v105
    %v117 = vpack.c.b16 %v108, %v107
    %v118 = vpack.c.b16 %v110, %v109
    %127 = vmatpush.bf16.msra.mxu0 %v118
    %128 = vmatpush.bf16.msra.mxu0 %v117
    %129 = vmatpush.bf16.msra.mxu0 %v116
    %130 = vmatpush.bf16.msra.mxu0 %v115
    %131 = vmatpush.bf16.msra.mxu0 %v114
    %132 = vmatpush.bf16.msra.mxu0 %v113
    %133 = vmatpush.bf16.msra.mxu0 %v112
    %134 = vmatpush.bf16.msra.mxu0 %v111
    %135 = vmatmul.bf16.gmra.mxu0 %v77
    %v136 = vpop.f32.mrf.mxu0
    %v137 = vadd.f32 %v78, %v136
    %v138 = vpop.f32.mrf.mxu0
    %139 = vdwg.mxu0
    %v140 = vmax.f32 %v137, 0.0
    %s141 = scalar_lea.vmem [#allocation4], 64
    %v142 = vld [vmem:[%s141] sm:$0xf]
    %v143 = vld [vmem:[%s141 + $0x4] sm:$0xf]
    %v144 = vld [vmem:[%s141 + $0x8] sm:$0xf]
    %v145 = vld [vmem:[%s141 + $0xc] sm:$0xf]
    %v146 = vld [vmem:[%s141 + $0x10] sm:$0xf]
    %v147 = vld [vmem:[%s141 + $0x14] sm:$0xf]
    %v148 = vld [vmem:[%s141 + $0x18] sm:$0xf]
    %v149 = vld [vmem:[%s141 + $0x1c] sm:$0xf]
    %v150 = vld [vmem:[%s141 + $0x20] sm:$0xf]
    %v151 = vld [vmem:[%s141 + $0x24] sm:$0xf]
    %v152 = vld [vmem:[%s141 + $0x28] sm:$0xf]
    %v153 = vld [vmem:[%s141 + $0x2c] sm:$0xf]
    %v154 = vld [vmem:[%s141 + $0x30] sm:$0xf]
    %v155 = vld [vmem:[%s141 + $0x34] sm:$0xf]
    %v156 = vld [vmem:[%s141 + $0x38] sm:$0xf]
    %v157 = vld [vmem:[%s141 + $0x3c] sm:$0xf]
    %v158 = vld [vmem:[#allocation6 + $0x1] sm:$0x1]
    %v159 = vpack.c.bf16 %v140, %v140
    %v160 = vperm.slane %v158, 0
    %v177 = vunpack.c.l.b16 %v142
    %v178 = vunpack.c.l.b16 %v143
    %v179 = vunpack.c.l.b16 %v144
    %v180 = vunpack.c.l.b16 %v145
    %v181 = vunpack.c.l.b16 %v146
    %v182 = vunpack.c.l.b16 %v147
    %v183 = vunpack.c.l.b16 %v148
    %v184 = vunpack.c.l.b16 %v149
    %v185 = vunpack.c.l.b16 %v150
    %v186 = vunpack.c.l.b16 %v151
    %v187 = vunpack.c.l.b16 %v152
    %v188 = vunpack.c.l.b16 %v153
    %v189 = vunpack.c.l.b16 %v154
    %v190 = vunpack.c.l.b16 %v155
    %v191 = vunpack.c.l.b16 %v156
    %v192 = vunpack.c.l.b16 %v157
    %v193 = vpack.c.b16 %v178, %v177
    %v194 = vpack.c.b16 %v180, %v179
    %v195 = vpack.c.b16 %v182, %v181
    %v196 = vpack.c.b16 %v184, %v183
    %v197 = vpack.c.b16 %v186, %v185
    %v198 = vpack.c.b16 %v188, %v187
    %v199 = vpack.c.b16 %v190, %v189
    %v200 = vpack.c.b16 %v192, %v191
    %209 = vmatpush.bf16.msra.mxu0 %v200
    %210 = vmatpush.bf16.msra.mxu0 %v199
    %211 = vmatpush.bf16.msra.mxu0 %v198
    %212 = vmatpush.bf16.msra.mxu0 %v197
    %213 = vmatpush.bf16.msra.mxu0 %v196
    %214 = vmatpush.bf16.msra.mxu0 %v195
    %215 = vmatpush.bf16.msra.mxu0 %v194
    %216 = vmatpush.bf16.msra.mxu0 %v193
    %217 = vmatmul.bf16.gmra.mxu0 %v159
    %v218 = vpop.f32.mrf.mxu0
    %v219 = vadd.f32 %v160, %v218
    %v220 = vpop.f32.mrf.mxu0
    %221 = vdwg.mxu0
    %v222 = vmax.f32 %v219, 0.0
    %s223 = scalar_lea.vmem [#allocation4], 128
    %v224 = vld [vmem:[%s223] sm:$0xf]
    %v225 = vld [vmem:[%s223 + $0x4] sm:$0xf]
    %v226 = vld [vmem:[%s223 + $0x8] sm:$0xf]
    %v227 = vld [vmem:[%s223 + $0xc] sm:$0xf]
    %v228 = vld [vmem:[%s223 + $0x10] sm:$0xf]
    %v229 = vld [vmem:[%s223 + $0x14] sm:$0xf]
    %v230 = vld [vmem:[%s223 + $0x18] sm:$0xf]
    %v231 = vld [vmem:[%s223 + $0x1c] sm:$0xf]
    %v232 = vld [vmem:[%s223 + $0x20] sm:$0xf]
    %v233 = vld [vmem:[%s223 + $0x24] sm:$0xf]
    %v234 = vld [vmem:[%s223 + $0x28] sm:$0xf]
    %v235 = vld [vmem:[%s223 + $0x2c] sm:$0xf]
    %v236 = vld [vmem:[%s223 + $0x30] sm:$0xf]
    %v237 = vld [vmem:[%s223 + $0x34] sm:$0xf]
    %v238 = vld [vmem:[%s223 + $0x38] sm:$0xf]
    %v239 = vld [vmem:[%s223 + $0x3c] sm:$0xf]
    %v240 = vld [vmem:[#allocation6 + $0x2] sm:$0x1]
    %v241 = vpack.c.bf16 %v222, %v222
    %v242 = vperm.slane %v240, 0
    %v259 = vunpack.c.l.b16 %v224
    %v260 = vunpack.c.l.b16 %v225
    %v261 = vunpack.c.l.b16 %v226
    %v262 = vunpack.c.l.b16 %v227
    %v263 = vunpack.c.l.b16 %v228
    %v264 = vunpack.c.l.b16 %v229
    %v265 = vunpack.c.l.b16 %v230
    %v266 = vunpack.c.l.b16 %v231
    %v267 = vunpack.c.l.b16 %v232
    %v268 = vunpack.c.l.b16 %v233
    %v269 = vunpack.c.l.b16 %v234
    %v270 = vunpack.c.l.b16 %v235
    %v271 = vunpack.c.l.b16 %v236
    %v272 = vunpack.c.l.b16 %v237
    %v273 = vunpack.c.l.b16 %v238
    %v274 = vunpack.c.l.b16 %v239
    %v275 = vpack.c.b16 %v260, %v259
    %v276 = vpack.c.b16 %v262, %v261
    %v277 = vpack.c.b16 %v264, %v263
    %v278 = vpack.c.b16 %v266, %v265
    %v279 = vpack.c.b16 %v268, %v267
    %v280 = vpack.c.b16 %v270, %v269
    %v281 = vpack.c.b16 %v272, %v271
    %v282 = vpack.c.b16 %v274, %v273
    %291 = vmatpush.bf16.msra.mxu0 %v282
    %292 = vmatpush.bf16.msra.mxu0 %v281
    %293 = vmatpush.bf16.msra.mxu0 %v280
    %294 = vmatpush.bf16.msra.mxu0 %v279
    %295 = vmatpush.bf16.msra.mxu0 %v278
    %296 = vmatpush.bf16.msra.mxu0 %v277
    %297 = vmatpush.bf16.msra.mxu0 %v276
    %298 = vmatpush.bf16.msra.mxu0 %v275
    %299 = vmatmul.bf16.gmra.mxu0 %v241
    %v300 = vpop.f32.mrf.mxu0
    %v301 = vadd.f32 %v242, %v300
    %v302 = vpop.f32.mrf.mxu0
    %303 = vdwg.mxu0
    %v304 = vmax.f32 %v301, 0.0
    %s305 = scalar_lea.vmem [#allocation4], 192
    %v306 = vld [vmem:[%s305] sm:$0xf]
    %v307 = vld [vmem:[%s305 + $0x4] sm:$0xf]
    %v308 = vld [vmem:[%s305 + $0x8] sm:$0xf]
    %v309 = vld [vmem:[%s305 + $0xc] sm:$0xf]
    %v310 = vld [vmem:[%s305 + $0x10] sm:$0xf]
    %v311 = vld [vmem:[%s305 + $0x14] sm:$0xf]
    %v312 = vld [vmem:[%s305 + $0x18] sm:$0xf]
    %v313 = vld [vmem:[%s305 + $0x1c] sm:$0xf]
    %v314 = vld [vmem:[%s305 + $0x20] sm:$0xf]
    %v315 = vld [vmem:[%s305 + $0x24] sm:$0xf]
    %v316 = vld [vmem:[%s305 + $0x28] sm:$0xf]
    %v317 = vld [vmem:[%s305 + $0x2c] sm:$0xf]
    %v318 = vld [vmem:[%s305 + $0x30] sm:$0xf]
    %v319 = vld [vmem:[%s305 + $0x34] sm:$0xf]
    %v320 = vld [vmem:[%s305 + $0x38] sm:$0xf]
    %v321 = vld [vmem:[%s305 + $0x3c] sm:$0xf]
    %v322 = vld [vmem:[#allocation6 + $0x3] sm:$0x1]
    %v323 = vpack.c.bf16 %v304, %v304
    %v324 = vperm.slane %v322, 0
    %v341 = vunpack.c.l.b16 %v306
    %v342 = vunpack.c.l.b16 %v307
    %v343 = vunpack.c.l.b16 %v308
    %v344 = vunpack.c.l.b16 %v309
    %v345 = vunpack.c.l.b16 %v310
    %v346 = vunpack.c.l.b16 %v311
    %v347 = vunpack.c.l.b16 %v312
    %v348 = vunpack.c.l.b16 %v313
    %v349 = vunpack.c.l.b16 %v314
    %v350 = vunpack.c.l.b16 %v315
    %v351 = vunpack.c.l.b16 %v316
    %v352 = vunpack.c.l.b16 %v317
    %v353 = vunpack.c.l.b16 %v318
    %v354 = vunpack.c.l.b16 %v319
    %v355 = vunpack.c.l.b16 %v320
    %v356 = vunpack.c.l.b16 %v321
    %v357 = vpack.c.b16 %v342, %v341
    %v358 = vpack.c.b16 %v344, %v343
    %v359 = vpack.c.b16 %v346, %v345
    %v360 = vpack.c.b16 %v348, %v347
    %v361 = vpack.c.b16 %v350, %v349
    %v362 = vpack.c.b16 %v352, %v351
    %v363 = vpack.c.b16 %v354, %v353
    %v364 = vpack.c.b16 %v356, %v355
    %373 = vmatpush.bf16.msra.mxu0 %v364
    %374 = vmatpush.bf16.msra.mxu0 %v363
    %375 = vmatpush.bf16.msra.mxu0 %v362
    %376 = vmatpush.bf16.msra.mxu0 %v361
    %377 = vmatpush.bf16.msra.mxu0 %v360
    %378 = vmatpush.bf16.msra.mxu0 %v359
    %379 = vmatpush.bf16.msra.mxu0 %v358
    %380 = vmatpush.bf16.msra.mxu0 %v357
    %381 = vmatmul.bf16.gmra.mxu0 %v323
    %v382 = vpop.f32.mrf.mxu0
    %v383 = vadd.f32 %v324, %v382
    %v384 = vpop.f32.mrf.mxu0
    %385 = vdwg.mxu0
    %vm386 = vcmask 31744
    %387 = vst.msk [vmem:[%s3] sm:$0xff] %vm386, %v383
    // Predicated region
    $region26: #{qnetwork_forward.1} parent=1 // pred_check
      _
    $region27: #{qnetwork_forward.1} parent=1 // pred_check_branch
      %389 = sbr.rel (0) target = $region29
    $region28: #{qnetwork_forward.1} parent=1 // pred_region
      _
    $region29: #{qnetwork_forward.1} parent=1 // pred_fallthru
      _
    // Predicated region
    $region30: #{qnetwork_forward.1} parent=1 // pred_check
      _
    $region31: #{qnetwork_forward.1} parent=1 // pred_check_branch
      %391 = sbr.rel (0) target = $region33
    $region32: #{qnetwork_forward.1} parent=1 // pred_region
      _
    $region33: #{qnetwork_forward.1} parent=1 // pred_fallthru
      _
    %392 = vsyncpa [#allocation3], 1
    %393 = vsyncpa [#allocation5], 1

</llo_original>
